<compile_context>
chip_gen: v7x
topology: tpu7x:2x2x1
jax: 0.10.0
libtpu: 0.0.40
codegen_flags: <defaults>
</compile_context>

<pallas_src>
import jax
import jax.numpy as jnp
from jax.experimental import pallas as pl
from jax.experimental.pallas import tpu as pltpu

EPSILON = 1e-6
IGNORE_INDEX = 255


def _cdiv(a, b):
    return -(-a // b)


def _plan_tiles(C, HW, pred_itemsize, lbl_itemsize, max_rows_per_tile=None,
                vmem_budget_bytes=24 * 1024 * 1024):
    """Pick (parts, tiles-per-part, rows-per-tile) for the (rows, 128) spatial
    re-tiling.  The per-step VMEM plan counts the double-buffered input blocks,
    the 3*C accumulator slabs and ~(2C + 8) live f32 intermediate slabs, and is
    capped well under v7x's 64 MiB VMEM."""
    R = _cdiv(HW, 128)                              # rows of 128 lanes
    scratch_bytes = 3 * C * 8 * 128 * 4             # lane-dense accumulators
    per_row = 128 * (2 * C * pred_itemsize          # pred block, double buffered
                     + 2 * lbl_itemsize             # label block, double buffered
                     + (2 * C + 8) * 4)             # live f32 intermediates
    tr_budget = max(8, (vmem_budget_bytes - scratch_bytes) // per_row)
    if max_rows_per_tile is not None:
        tr_budget = max(1, min(tr_budget, max_rows_per_tile))

    # sublane multiple required by the narrowest input dtype (f32:8 bf16:16 i8:32)
    sub = max(8 * max(1, 4 // pred_itemsize), 8 * max(1, 4 // lbl_itemsize))

    parts = 2 if R >= 64 else 1        # v7x megacore: 2*N parallel units
    rows_per_part = _cdiv(R, parts)
    T = _cdiv(rows_per_part, tr_budget)             # row-tiles per part
    TR = _cdiv(rows_per_part, T)                    # rows per tile
    if parts * T > 1:
        TR = _cdiv(TR, sub) * sub                   # (sub, 128) layout constraint
    R_pad = parts * T * TR
    n_pad = R_pad * 128 - HW
    return parts, T, TR, R_pad, n_pad


def _make_gdl_kernel(C, TR, T, ignore_index):
    fold = (TR % 8 == 0)        # fold each row tile into an (8, 128) slab

    def kernel(fix_ref, pred_ref, lbl_ref, t_out, i_out, p_out,
               t_acc, i_acc, p_acc):
        t = pl.program_id(2)    # row-tile index within this (batch, part)

        @pl.when(t == 0)
        def _():
            t_acc[...] = jnp.zeros_like(t_acc)
            i_acc[...] = jnp.zeros_like(i_acc)
            p_acc[...] = jnp.zeros_like(p_acc)

        # Labels at native dtype -> int32, then the data-dependent ignore_index
        # rewrite driven by two scalar-prefetched values [do_replace, value].
        lbl = lbl_ref[...]
        if lbl.dtype != jnp.int32:
            lbl = lbl.astype(jnp.int32)
        do_rep = fix_ref[0]
        rep_val = fix_ref[1]
        lbl = jnp.where(jnp.logical_and(do_rep > 0, lbl == ignore_index),
                        rep_val, lbl)

        # Channel softmax as elementwise ops over C dense (TR, 128) slabs
        # (channel is a leading, non-layout axis -> no cross-sublane XLU work).
        xs = [pred_ref[c].astype(jnp.float32) for c in range(C)]
        m = xs[0]
        for c in range(1, C):
            m = jnp.maximum(m, xs[c])
        es = []
        s = None
        for c in range(C):
            e_c = jnp.exp(xs[c] - m)
            es.append(e_c)
            s = e_c if s is None else s + e_c
        inv = 1.0 / s          # exact divide: keeps the 1e-5 validation tolerance

        def _fold(v):
            if fold:
                # sublane-aligned regroup (free) + leading-axis VALU adds
                return jnp.sum(v.reshape(TR // 8, 8, 128), axis=0)
            return v

        # Per-channel partial sums into lane-dense VMEM accumulators.
        for c in range(C):
            p_c = es[c] * inv
            is_c = lbl == c
            t_acc[c] += _fold(is_c.astype(jnp.float32))
            p_acc[c] += _fold(p_c)
            i_acc[c] += _fold(jnp.where(is_c, p_c, 0.0))

        # One cross-sublane reduce + one lane-dense (C, 128) store per (n, part).
        @pl.when(t == T - 1)
        def _():
            def _rows(acc):
                return jnp.concatenate(
                    [jnp.sum(acc[c], axis=0, keepdims=True) for c in range(C)],
                    axis=0)
            t_out[...] = _rows(t_acc)
            i_out[...] = _rows(i_acc)
            p_out[...] = _rows(p_acc)

    return kernel


def generalized_dice_loss(prediction, target, epsilon=EPSILON,
                          ignore_index=IGNORE_INDEX, max_rows_per_tile=None):
    """prediction: (N, C, H, W) float logits; target: (N, H, W) integer labels."""
    N, C, H, W = prediction.shape
    HW = H * W

    # Scalars for the data-dependent ignore_index rewrite (mirrors the torch
    # branch); computed on the native-dtype target, applied in-kernel.
    tmin = jnp.min(target).astype(jnp.int32)
    tmax = jnp.max(target).astype(jnp.int32)
    in_range = jnp.logical_and(ignore_index >= tmin, ignore_index < tmax)
    has_ignore = jnp.any(target == ignore_index)
    do_replace = jnp.logical_and(jnp.logical_not(in_range), has_ignore)
    fixup = jnp.stack([do_replace.astype(jnp.int32), tmin])

    # TODO(synk): the torch N==1 concat branch is shape-inconsistent in the
    # original module and is not replicated here; N==1 uses standard GDL.

    parts, T, TR, R_pad, n_pad = _plan_tiles(
        C, HW, prediction.dtype.itemsize, target.dtype.itemsize,
        max_rows_per_tile=max_rows_per_tile)

    # (rows, 128) spatial re-tiling.  Only pads (one fused XLA pass) when the
    # spatial extent is not already a multiple of the chosen tile footprint;
    # otherwise dtypes/layout are untouched (native-dtype HBM reads).
    pred_flat = prediction.reshape(N, C, HW)
    lbl_flat = target.reshape(N, HW)
    if n_pad:
        pad_lbl = -1 if ignore_index != -1 else -2   # never a class, never ignored
        pred_flat = jnp.pad(pred_flat, ((0, 0), (0, 0), (0, n_pad)))
        lbl_flat = jnp.pad(lbl_flat.astype(jnp.int32), ((0, 0), (0, n_pad)),
                           constant_values=pad_lbl)
    pred_arr = pred_flat.reshape(N, C, R_pad, 128)
    lbl_arr = lbl_flat.reshape(N, R_pad, 128)

    acc_rows = 8 if TR % 8 == 0 else TR
    kernel = _make_gdl_kernel(C, TR, T, ignore_index)
    out_sds = jax.ShapeDtypeStruct((N, parts, C, 128), jnp.float32)

    t_part, i_part, p_part = pl.pallas_call(
        kernel,
        out_shape=(out_sds, out_sds, out_sds),
        grid_spec=pltpu.PrefetchScalarGridSpec(
            num_scalar_prefetch=1,
            grid=(N, parts, T),
            in_specs=[
                pl.BlockSpec((None, C, TR, 128),
                             lambda n, p, t, fix: (n, 0, p * T + t, 0)),
                pl.BlockSpec((None, TR, 128),
                             lambda n, p, t, fix: (n, p * T + t, 0)),
            ],
            out_specs=[
                pl.BlockSpec((None, None, C, 128),
                             lambda n, p, t, fix: (n, p, 0, 0))
                for _ in range(3)
            ],
            scratch_shapes=[pltpu.VMEM((C, acc_rows, 128), jnp.float32)
                            for _ in range(3)],
        ),
        compiler_params=pltpu.CompilerParams(
            dimension_semantics=("parallel", "parallel", "arbitrary"),
            vmem_limit_bytes=48 * 1024 * 1024,   # plan is ~24 MiB; fits v7x 64 MiB
        ),
    )(fixup, pred_arr, lbl_arr)

    # Tiny scalar epilogue over N * parts * C * 128 partial sums.
    t_sum = jnp.sum(t_part, axis=(0, 1, 3))          # (C,)
    i_sum = jnp.sum(i_part, axis=(0, 1, 3))          # (C,)
    p_sum = jnp.sum(p_part, axis=(0, 1, 3))          # (C,)
    if n_pad:
        # Zero-padded logits give an exactly uniform softmax (1/C per channel)
        # at each of the N * n_pad padded pixels; remove that known contribution.
        p_sum = p_sum - (N * n_pad) / C
    w = 1.0 / jnp.maximum(t_sum ** 2, epsilon)
    intersect = jnp.sum(i_sum * w)
    denominator = jnp.sum(jnp.maximum((p_sum + t_sum) * w, epsilon))
    return 1.0 - 2.0 * (intersect / denominator)


def _reference_gdl(prediction, target, epsilon=EPSILON, ignore_index=IGNORE_INDEX):
    """Pure-JAX reference mirroring the PyTorch forward (N >= 2)."""
    N, C, H, W = prediction.shape
    tmin = jnp.min(target)
    tmax = jnp.max(target)
    in_range = jnp.logical_and(ignore_index >= tmin, ignore_index < tmax)
    has_ignore = jnp.any(target == ignore_index)
    do_replace = jnp.logical_and(jnp.logical_not(in_range), has_ignore)
    target = jnp.where(jnp.logical_and(do_replace, target == ignore_index), tmin, target)

    one_hot = jax.nn.one_hot(target, C, axis=1, dtype=jnp.float32)   # (N, C, H, W)
    output = jax.nn.softmax(prediction, axis=1)
    pred = jnp.transpose(output, (1, 0, 2, 3)).reshape(C, -1)
    tgt = jnp.transpose(one_hot, (1, 0, 2, 3)).reshape(C, -1)
    w_l = 1.0 / jnp.maximum(tgt.sum(-1) ** 2, epsilon)
    intersect = (pred * tgt).sum(-1) * w_l
    denominator = jnp.maximum((pred + tgt).sum(-1) * w_l, epsilon)
    return 1.0 - 2.0 * (intersect.sum() / denominator.sum())


if __name__ == "__main__":
    key = jax.random.PRNGKey(0)

    # Case 1: lane-aligned spatial size; exercises the ignore_index fixup path.
    k1, k2 = jax.random.split(key)
    N, C, H, W = 2, 4, 16, 16
    prediction = jax.random.normal(k1, (N, C, H, W), dtype=jnp.float32)
    target = jax.random.randint(k2, (N, H, W), 0, C, dtype=jnp.int32)
    target = target.at[0, 0, 0].set(IGNORE_INDEX).at[1, 3, 7].set(IGNORE_INDEX)
    loss = generalized_dice_loss(prediction, target)
    jax.block_until_ready(loss)
    ref = _reference_gdl(prediction, target)
    assert jnp.allclose(loss, ref, atol=1e-5, rtol=1e-5), (loss, ref)

    # Case 2: spatial size not a multiple of 128; exercises padding + the
    # epilogue correction for zero-padded logits.
    k3, k4 = jax.random.split(k1)
    N2, C2, H2, W2 = 2, 3, 18, 18
    prediction2 = jax.random.normal(k3, (N2, C2, H2, W2), dtype=jnp.float32)
    target2 = jax.random.randint(k4, (N2, H2, W2), 0, C2, dtype=jnp.int32)
    loss2 = generalized_dice_loss(prediction2, target2)
    jax.block_until_ready(loss2)
    ref2 = _reference_gdl(prediction2, target2)
    assert jnp.allclose(loss2, ref2, atol=1e-5, rtol=1e-5), (loss2, ref2)

    # Case 3: forces parts=2 (megacore split) and multiple row tiles per part
    # (multi-tile accumulator path + folding); slightly looser tolerance for the
    # different summation order.
    k5, k6 = jax.random.split(k3)
    N3, C3, H3, W3 = 2, 3, 96, 96
    prediction3 = jax.random.normal(k5, (N3, C3, H3, W3), dtype=jnp.float32)
    target3 = jax.random.randint(k6, (N3, H3, W3), 0, C3, dtype=jnp.int32)
    loss3 = generalized_dice_loss(prediction3, target3, max_rows_per_tile=16)
    jax.block_until_ready(loss3)
    ref3 = _reference_gdl(prediction3, target3)
    assert jnp.allclose(loss3, ref3, atol=2e-5, rtol=2e-5), (loss3, ref3)

    print("KERNEL_OK")
</pallas_src>

<mosaic_0001>
module attributes {stable_mosaic.version = 11 : i64} {
  func.func @kernel(%arg0: i32, %arg1: i32, %arg2: i32, %arg3: memref<2xi32, #tpu.memory_space<smem>>, %arg4: memref<1x4x2x128xf32, #tpu.memory_space<vmem>>, %arg5: memref<1x2x128xi32, #tpu.memory_space<vmem>>, %arg6: memref<1x1x4x128xf32, #tpu.memory_space<vmem>>, %arg7: memref<1x1x4x128xf32, #tpu.memory_space<vmem>>, %arg8: memref<1x1x4x128xf32, #tpu.memory_space<vmem>>, %arg9: memref<4x2x128xf32, #tpu.memory_space<vmem>>, %arg10: memref<4x2x128xf32, #tpu.memory_space<vmem>>, %arg11: memref<4x2x128xf32, #tpu.memory_space<vmem>>) attributes {dimension_semantics = [#tpu.dimension_semantics<parallel>, #tpu.dimension_semantics<parallel>, #tpu.dimension_semantics<arbitrary>], iteration_bounds = array<i64: 2, 1, 1>, scalar_prefetch = 1 : i64, scratch_operands = 3 : i64, tpu.core_type = #tpu.core_type<tc>, window_params = [{transform_indices = @transform_0, window_bounds = array<i64: 1, 4, 2, 128>}, {transform_indices = @transform_1, window_bounds = array<i64: 1, 2, 128>}, {transform_indices = @transform_2, window_bounds = array<i64: 1, 1, 4, 128>}, {transform_indices = @transform_3, window_bounds = array<i64: 1, 1, 4, 128>}, {transform_indices = @transform_4, window_bounds = array<i64: 1, 1, 4, 128>}]} {
    %c0_i32 = arith.constant 0 : i32
    %0 = arith.cmpi eq, %arg2, %c0_i32 : i32
    %1 = arith.extui %0 : i1 to i32
    %c0_i32_0 = arith.constant 0 : i32
    %2 = arith.cmpi ne, %1, %c0_i32_0 : i32
    scf.if %2 {
      %cst_98 = arith.constant 0.000000e+00 : f32
      %141 = vector.broadcast %cst_98 : f32 to vector<4x2x128xf32>
      %c0_99 = arith.constant 0 : index
      %c0_100 = arith.constant 0 : index
      %c0_101 = arith.constant 0 : index
      %142 = vector.load %arg9[%c0_99, %c0_100, %c0_101] : memref<4x2x128xf32, #tpu.memory_space<vmem>>, vector<4x2x128xf32>
      tpu.vector_store %arg9[%c0_99, %c0_100, %c0_101], %141 {strides = array<i32>} : memref<4x2x128xf32, #tpu.memory_space<vmem>>, vector<4x2x128xf32>,
      %cst_102 = arith.constant 0.000000e+00 : f32
      %143 = vector.broadcast %cst_102 : f32 to vector<4x2x128xf32>
      %c0_103 = arith.constant 0 : index
      %c0_104 = arith.constant 0 : index
      %c0_105 = arith.constant 0 : index
      %144 = vector.load %arg10[%c0_103, %c0_104, %c0_105] : memref<4x2x128xf32, #tpu.memory_space<vmem>>, vector<4x2x128xf32>
      tpu.vector_store %arg10[%c0_103, %c0_104, %c0_105], %143 {strides = array<i32>} : memref<4x2x128xf32, #tpu.memory_space<vmem>>, vector<4x2x128xf32>,
      %cst_106 = arith.constant 0.000000e+00 : f32
      %145 = vector.broadcast %cst_106 : f32 to vector<4x2x128xf32>
      %c0_107 = arith.constant 0 : index
      %c0_108 = arith.constant 0 : index
      %c0_109 = arith.constant 0 : index
      %146 = vector.load %arg11[%c0_107, %c0_108, %c0_109] : memref<4x2x128xf32, #tpu.memory_space<vmem>>, vector<4x2x128xf32>
      tpu.vector_store %arg11[%c0_107, %c0_108, %c0_109], %145 {strides = array<i32>} : memref<4x2x128xf32, #tpu.memory_space<vmem>>, vector<4x2x128xf32>,
    } else {
    }
    %c0 = arith.constant 0 : index
    %c0_1 = arith.constant 0 : index
    %c0_2 = arith.constant 0 : index
    %3 = vector.load %arg5[%c0, %c0_1, %c0_2] : memref<1x2x128xi32, #tpu.memory_space<vmem>>, vector<1x2x128xi32>
    %4 = vector.shape_cast %3 : vector<1x2x128xi32> to vector<2x128xi32>
    %c0_3 = arith.constant 0 : index
    %5 = memref.load %arg3[%c0_3] : memref<2xi32, #tpu.memory_space<smem>>
    %c1 = arith.constant 1 : index
    %6 = memref.load %arg3[%c1] : memref<2xi32, #tpu.memory_space<smem>>
    %c0_i32_4 = arith.constant 0 : i32
    %7 = arith.cmpi sgt, %5, %c0_i32_4 : i32
    %c255_i32 = arith.constant 255 : i32
    %8 = vector.broadcast %c255_i32 : i32 to vector<2x128xi32>
    %9 = arith.cmpi eq, %4, %8 : vector<2x128xi32>
    %10 = vector.broadcast %7 : i1 to vector<2x128xi1>
    %11 = arith.andi %10, %9 : vector<2x128xi1>
    %12 = vector.broadcast %6 : i32 to vector<2x128xi32>
    %13 = arith.select %11, %12, %4 : vector<2x128xi1>, vector<2x128xi32>
    %c0_5 = arith.constant 0 : index
    %c0_6 = arith.constant 0 : index
    %c0_7 = arith.constant 0 : index
    %c0_8 = arith.constant 0 : index
    %14 = vector.load %arg4[%c0_5, %c0_6, %c0_7, %c0_8] : memref<1x4x2x128xf32, #tpu.memory_space<vmem>>, vector<1x1x2x128xf32>
    %15 = vector.shape_cast %14 : vector<1x1x2x128xf32> to vector<2x128xf32>
    %c0_9 = arith.constant 0 : index
    %c1_10 = arith.constant 1 : index
    %c0_11 = arith.constant 0 : index
    %c0_12 = arith.constant 0 : index
    %16 = vector.load %arg4[%c0_9, %c1_10, %c0_11, %c0_12] : memref<1x4x2x128xf32, #tpu.memory_space<vmem>>, vector<1x1x2x128xf32>
    %17 = vector.shape_cast %16 : vector<1x1x2x128xf32> to vector<2x128xf32>
    %c0_13 = arith.constant 0 : index
    %c2 = arith.constant 2 : index
    %c0_14 = arith.constant 0 : index
    %c0_15 = arith.constant 0 : index
    %18 = vector.load %arg4[%c0_13, %c2, %c0_14, %c0_15] : memref<1x4x2x128xf32, #tpu.memory_space<vmem>>, vector<1x1x2x128xf32>
    %19 = vector.shape_cast %18 : vector<1x1x2x128xf32> to vector<2x128xf32>
    %c0_16 = arith.constant 0 : index
    %c3 = arith.constant 3 : index
    %c0_17 = arith.constant 0 : index
    %c0_18 = arith.constant 0 : index
    %20 = vector.load %arg4[%c0_16, %c3, %c0_17, %c0_18] : memref<1x4x2x128xf32, #tpu.memory_space<vmem>>, vector<1x1x2x128xf32>
    %21 = vector.shape_cast %20 : vector<1x1x2x128xf32> to vector<2x128xf32>
    %22 = arith.maximumf %15, %17 : vector<2x128xf32>
    %23 = arith.maximumf %22, %19 : vector<2x128xf32>
    %24 = arith.maximumf %23, %21 : vector<2x128xf32>
    %25 = arith.subf %15, %24 : vector<2x128xf32>
    %26 = math.exp %25 : vector<2x128xf32>
    %27 = arith.subf %17, %24 : vector<2x128xf32>
    %28 = math.exp %27 : vector<2x128xf32>
    %29 = arith.addf %26, %28 : vector<2x128xf32>
    %30 = arith.subf %19, %24 : vector<2x128xf32>
    %31 = math.exp %30 : vector<2x128xf32>
    %32 = arith.addf %29, %31 : vector<2x128xf32>
    %33 = arith.subf %21, %24 : vector<2x128xf32>
    %34 = math.exp %33 : vector<2x128xf32>
    %35 = arith.addf %32, %34 : vector<2x128xf32>
    %cst = arith.constant 1.000000e+00 : f32
    %36 = vector.broadcast %cst : f32 to vector<2x128xf32>
    %37 = arith.divf %36, %35 : vector<2x128xf32>
    %38 = arith.mulf %26, %37 : vector<2x128xf32>
    %c0_i32_19 = arith.constant 0 : i32
    %39 = vector.broadcast %c0_i32_19 : i32 to vector<2x128xi32>
    %40 = arith.cmpi eq, %13, %39 : vector<2x128xi32>
    %c0_20 = arith.constant 0 : index
    %c0_21 = arith.constant 0 : index
    %c0_22 = arith.constant 0 : index
    %41 = vector.load %arg9[%c0_20, %c0_21, %c0_22] : memref<4x2x128xf32, #tpu.memory_space<vmem>>, vector<1x2x128xf32>
    %42 = vector.shape_cast %41 : vector<1x2x128xf32> to vector<2x128xf32>
    %43 = arith.extui %40 : vector<2x128xi1> to vector<2x128xi32>
    %44 = arith.sitofp %43 : vector<2x128xi32> to vector<2x128xf32>
    %45 = arith.addf %42, %44 : vector<2x128xf32>
    %c0_23 = arith.constant 0 : index
    %c0_24 = arith.constant 0 : index
    %c0_25 = arith.constant 0 : index
    %46 = vector.load %arg9[%c0_23, %c0_24, %c0_25] : memref<4x2x128xf32, #tpu.memory_space<vmem>>, vector<1x2x128xf32>
    %47 = vector.shape_cast %46 : vector<1x2x128xf32> to vector<2x128xf32>
    %48 = vector.shape_cast %45 : vector<2x128xf32> to vector<1x2x128xf32>
    tpu.vector_store %arg9[%c0_23, %c0_24, %c0_25], %48 {strides = array<i32>} : memref<4x2x128xf32, #tpu.memory_space<vmem>>, vector<1x2x128xf32>,
    %c0_26 = arith.constant 0 : index
    %c0_27 = arith.constant 0 : index
    %c0_28 = arith.constant 0 : index
    %49 = vector.load %arg11[%c0_26, %c0_27, %c0_28] : memref<4x2x128xf32, #tpu.memory_space<vmem>>, vector<1x2x128xf32>
    %50 = vector.shape_cast %49 : vector<1x2x128xf32> to vector<2x128xf32>
    %51 = arith.addf %50, %38 : vector<2x128xf32>
    %c0_29 = arith.constant 0 : index
    %c0_30 = arith.constant 0 : index
    %c0_31 = arith.constant 0 : index
    %52 = vector.load %arg11[%c0_29, %c0_30, %c0_31] : memref<4x2x128xf32, #tpu.memory_space<vmem>>, vector<1x2x128xf32>
    %53 = vector.shape_cast %52 : vector<1x2x128xf32> to vector<2x128xf32>
    %54 = vector.shape_cast %51 : vector<2x128xf32> to vector<1x2x128xf32>
    tpu.vector_store %arg11[%c0_29, %c0_30, %c0_31], %54 {strides = array<i32>} : memref<4x2x128xf32, #tpu.memory_space<vmem>>, vector<1x2x128xf32>,
    %c0_32 = arith.constant 0 : index
    %c0_33 = arith.constant 0 : index
    %c0_34 = arith.constant 0 : index
    %55 = vector.load %arg10[%c0_32, %c0_33, %c0_34] : memref<4x2x128xf32, #tpu.memory_space<vmem>>, vector<1x2x128xf32>
    %56 = vector.shape_cast %55 : vector<1x2x128xf32> to vector<2x128xf32>
    %cst_35 = arith.constant 0.000000e+00 : f32
    %57 = vector.broadcast %cst_35 : f32 to vector<2x128xf32>
    %58 = arith.select %40, %38, %57 : vector<2x128xi1>, vector<2x128xf32>
    %59 = arith.addf %56, %58 : vector<2x128xf32>
    %c0_36 = arith.constant 0 : index
    %c0_37 = arith.constant 0 : index
    %c0_38 = arith.constant 0 : index
    %60 = vector.load %arg10[%c0_36, %c0_37, %c0_38] : memref<4x2x128xf32, #tpu.memory_space<vmem>>, vector<1x2x128xf32>
    %61 = vector.shape_cast %60 : vector<1x2x128xf32> to vector<2x128xf32>
    %62 = vector.shape_cast %59 : vector<2x128xf32> to vector<1x2x128xf32>
    tpu.vector_store %arg10[%c0_36, %c0_37, %c0_38], %62 {strides = array<i32>} : memref<4x2x128xf32, #tpu.memory_space<vmem>>, vector<1x2x128xf32>,
    %63 = arith.mulf %28, %37 : vector<2x128xf32>
    %c1_i32 = arith.constant 1 : i32
    %64 = vector.broadcast %c1_i32 : i32 to vector<2x128xi32>
    %65 = arith.cmpi eq, %13, %64 : vector<2x128xi32>
    %c1_39 = arith.constant 1 : index
    %c0_40 = arith.constant 0 : index
    %c0_41 = arith.constant 0 : index
    %66 = vector.load %arg9[%c1_39, %c0_40, %c0_41] : memref<4x2x128xf32, #tpu.memory_space<vmem>>, vector<1x2x128xf32>
    %67 = vector.shape_cast %66 : vector<1x2x128xf32> to vector<2x128xf32>
    %68 = arith.extui %65 : vector<2x128xi1> to vector<2x128xi32>
    %69 = arith.sitofp %68 : vector<2x128xi32> to vector<2x128xf32>
    %70 = arith.addf %67, %69 : vector<2x128xf32>
    %c1_42 = arith.constant 1 : index
    %c0_43 = arith.constant 0 : index
    %c0_44 = arith.constant 0 : index
    %71 = vector.load %arg9[%c1_42, %c0_43, %c0_44] : memref<4x2x128xf32, #tpu.memory_space<vmem>>, vector<1x2x128xf32>
    %72 = vector.shape_cast %71 : vector<1x2x128xf32> to vector<2x128xf32>
    %73 = vector.shape_cast %70 : vector<2x128xf32> to vector<1x2x128xf32>
    tpu.vector_store %arg9[%c1_42, %c0_43, %c0_44], %73 {strides = array<i32>} : memref<4x2x128xf32, #tpu.memory_space<vmem>>, vector<1x2x128xf32>,
    %c1_45 = arith.constant 1 : index
    %c0_46 = arith.constant 0 : index
    %c0_47 = arith.constant 0 : index
    %74 = vector.load %arg11[%c1_45, %c0_46, %c0_47] : memref<4x2x128xf32, #tpu.memory_space<vmem>>, vector<1x2x128xf32>
    %75 = vector.shape_cast %74 : vector<1x2x128xf32> to vector<2x128xf32>
    %76 = arith.addf %75, %63 : vector<2x128xf32>
    %c1_48 = arith.constant 1 : index
    %c0_49 = arith.constant 0 : index
    %c0_50 = arith.constant 0 : index
    %77 = vector.load %arg11[%c1_48, %c0_49, %c0_50] : memref<4x2x128xf32, #tpu.memory_space<vmem>>, vector<1x2x128xf32>
    %78 = vector.shape_cast %77 : vector<1x2x128xf32> to vector<2x128xf32>
    %79 = vector.shape_cast %76 : vector<2x128xf32> to vector<1x2x128xf32>
    tpu.vector_store %arg11[%c1_48, %c0_49, %c0_50], %79 {strides = array<i32>} : memref<4x2x128xf32, #tpu.memory_space<vmem>>, vector<1x2x128xf32>,
    %c1_51 = arith.constant 1 : index
    %c0_52 = arith.constant 0 : index
    %c0_53 = arith.constant 0 : index
    %80 = vector.load %arg10[%c1_51, %c0_52, %c0_53] : memref<4x2x128xf32, #tpu.memory_space<vmem>>, vector<1x2x128xf32>
    %81 = vector.shape_cast %80 : vector<1x2x128xf32> to vector<2x128xf32>
    %cst_54 = arith.constant 0.000000e+00 : f32
    %82 = vector.broadcast %cst_54 : f32 to vector<2x128xf32>
    %83 = arith.select %65, %63, %82 : vector<2x128xi1>, vector<2x128xf32>
    %84 = arith.addf %81, %83 : vector<2x128xf32>
    %c1_55 = arith.constant 1 : index
    %c0_56 = arith.constant 0 : index
    %c0_57 = arith.constant 0 : index
    %85 = vector.load %arg10[%c1_55, %c0_56, %c0_57] : memref<4x2x128xf32, #tpu.memory_space<vmem>>, vector<1x2x128xf32>
    %86 = vector.shape_cast %85 : vector<1x2x128xf32> to vector<2x128xf32>
    %87 = vector.shape_cast %84 : vector<2x128xf32> to vector<1x2x128xf32>
    tpu.vector_store %arg10[%c1_55, %c0_56, %c0_57], %87 {strides = array<i32>} : memref<4x2x128xf32, #tpu.memory_space<vmem>>, vector<1x2x128xf32>,
    %88 = arith.mulf %31, %37 : vector<2x128xf32>
    %c2_i32 = arith.constant 2 : i32
    %89 = vector.broadcast %c2_i32 : i32 to vector<2x128xi32>
    %90 = arith.cmpi eq, %13, %89 : vector<2x128xi32>
    %c2_58 = arith.constant 2 : index
    %c0_59 = arith.constant 0 : index
    %c0_60 = arith.constant 0 : index
    %91 = vector.load %arg9[%c2_58, %c0_59, %c0_60] : memref<4x2x128xf32, #tpu.memory_space<vmem>>, vector<1x2x128xf32>
    %92 = vector.shape_cast %91 : vector<1x2x128xf32> to vector<2x128xf32>
    %93 = arith.extui %90 : vector<2x128xi1> to vector<2x128xi32>
    %94 = arith.sitofp %93 : vector<2x128xi32> to vector<2x128xf32>
    %95 = arith.addf %92, %94 : vector<2x128xf32>
    %c2_61 = arith.constant 2 : index
    %c0_62 = arith.constant 0 : index
    %c0_63 = arith.constant 0 : index
    %96 = vector.load %arg9[%c2_61, %c0_62, %c0_63] : memref<4x2x128xf32, #tpu.memory_space<vmem>>, vector<1x2x128xf32>
    %97 = vector.shape_cast %96 : vector<1x2x128xf32> to vector<2x128xf32>
    %98 = vector.shape_cast %95 : vector<2x128xf32> to vector<1x2x128xf32>
    tpu.vector_store %arg9[%c2_61, %c0_62, %c0_63], %98 {strides = array<i32>} : memref<4x2x128xf32, #tpu.memory_space<vmem>>, vector<1x2x128xf32>,
    %c2_64 = arith.constant 2 : index
    %c0_65 = arith.constant 0 : index
    %c0_66 = arith.constant 0 : index
    %99 = vector.load %arg11[%c2_64, %c0_65, %c0_66] : memref<4x2x128xf32, #tpu.memory_space<vmem>>, vector<1x2x128xf32>
    %100 = vector.shape_cast %99 : vector<1x2x128xf32> to vector<2x128xf32>
    %101 = arith.addf %100, %88 : vector<2x128xf32>
    %c2_67 = arith.constant 2 : index
    %c0_68 = arith.constant 0 : index
    %c0_69 = arith.constant 0 : index
    %102 = vector.load %arg11[%c2_67, %c0_68, %c0_69] : memref<4x2x128xf32, #tpu.memory_space<vmem>>, vector<1x2x128xf32>
    %103 = vector.shape_cast %102 : vector<1x2x128xf32> to vector<2x128xf32>
    %104 = vector.shape_cast %101 : vector<2x128xf32> to vector<1x2x128xf32>
    tpu.vector_store %arg11[%c2_67, %c0_68, %c0_69], %104 {strides = array<i32>} : memref<4x2x128xf32, #tpu.memory_space<vmem>>, vector<1x2x128xf32>,
    %c2_70 = arith.constant 2 : index
    %c0_71 = arith.constant 0 : index
    %c0_72 = arith.constant 0 : index
    %105 = vector.load %arg10[%c2_70, %c0_71, %c0_72] : memref<4x2x128xf32, #tpu.memory_space<vmem>>, vector<1x2x128xf32>
    %106 = vector.shape_cast %105 : vector<1x2x128xf32> to vector<2x128xf32>
    %cst_73 = arith.constant 0.000000e+00 : f32
    %107 = vector.broadcast %cst_73 : f32 to vector<2x128xf32>
    %108 = arith.select %90, %88, %107 : vector<2x128xi1>, vector<2x128xf32>
    %109 = arith.addf %106, %108 : vector<2x128xf32>
    %c2_74 = arith.constant 2 : index
    %c0_75 = arith.constant 0 : index
    %c0_76 = arith.constant 0 : index
    %110 = vector.load %arg10[%c2_74, %c0_75, %c0_76] : memref<4x2x128xf32, #tpu.memory_space<vmem>>, vector<1x2x128xf32>
    %111 = vector.shape_cast %110 : vector<1x2x128xf32> to vector<2x128xf32>
    %112 = vector.shape_cast %109 : vector<2x128xf32> to vector<1x2x128xf32>
    tpu.vector_store %arg10[%c2_74, %c0_75, %c0_76], %112 {strides = array<i32>} : memref<4x2x128xf32, #tpu.memory_space<vmem>>, vector<1x2x128xf32>,
    %113 = arith.mulf %34, %37 : vector<2x128xf32>
    %c3_i32 = arith.constant 3 : i32
    %114 = vector.broadcast %c3_i32 : i32 to vector<2x128xi32>
    %115 = arith.cmpi eq, %13, %114 : vector<2x128xi32>
    %c3_77 = arith.constant 3 : index
    %c0_78 = arith.constant 0 : index
    %c0_79 = arith.constant 0 : index
    %116 = vector.load %arg9[%c3_77, %c0_78, %c0_79] : memref<4x2x128xf32, #tpu.memory_space<vmem>>, vector<1x2x128xf32>
    %117 = vector.shape_cast %116 : vector<1x2x128xf32> to vector<2x128xf32>
    %118 = arith.extui %115 : vector<2x128xi1> to vector<2x128xi32>
    %119 = arith.sitofp %118 : vector<2x128xi32> to vector<2x128xf32>
    %120 = arith.addf %117, %119 : vector<2x128xf32>
    %c3_80 = arith.constant 3 : index
    %c0_81 = arith.constant 0 : index
    %c0_82 = arith.constant 0 : index
    %121 = vector.load %arg9[%c3_80, %c0_81, %c0_82] : memref<4x2x128xf32, #tpu.memory_space<vmem>>, vector<1x2x128xf32>
    %122 = vector.shape_cast %121 : vector<1x2x128xf32> to vector<2x128xf32>
    %123 = vector.shape_cast %120 : vector<2x128xf32> to vector<1x2x128xf32>
    tpu.vector_store %arg9[%c3_80, %c0_81, %c0_82], %123 {strides = array<i32>} : memref<4x2x128xf32, #tpu.memory_space<vmem>>, vector<1x2x128xf32>,
    %c3_83 = arith.constant 3 : index
    %c0_84 = arith.constant 0 : index
    %c0_85 = arith.constant 0 : index
    %124 = vector.load %arg11[%c3_83, %c0_84, %c0_85] : memref<4x2x128xf32, #tpu.memory_space<vmem>>, vector<1x2x128xf32>
    %125 = vector.shape_cast %124 : vector<1x2x128xf32> to vector<2x128xf32>
    %126 = arith.addf %125, %113 : vector<2x128xf32>
    %c3_86 = arith.constant 3 : index
    %c0_87 = arith.constant 0 : index
    %c0_88 = arith.constant 0 : index
    %127 = vector.load %arg11[%c3_86, %c0_87, %c0_88] : memref<4x2x128xf32, #tpu.memory_space<vmem>>, vector<1x2x128xf32>
    %128 = vector.shape_cast %127 : vector<1x2x128xf32> to vector<2x128xf32>
    %129 = vector.shape_cast %126 : vector<2x128xf32> to vector<1x2x128xf32>
    tpu.vector_store %arg11[%c3_86, %c0_87, %c0_88], %129 {strides = array<i32>} : memref<4x2x128xf32, #tpu.memory_space<vmem>>, vector<1x2x128xf32>,
    %c3_89 = arith.constant 3 : index
    %c0_90 = arith.constant 0 : index
    %c0_91 = arith.constant 0 : index
    %130 = vector.load %arg10[%c3_89, %c0_90, %c0_91] : memref<4x2x128xf32, #tpu.memory_space<vmem>>, vector<1x2x128xf32>
    %131 = vector.shape_cast %130 : vector<1x2x128xf32> to vector<2x128xf32>
    %cst_92 = arith.constant 0.000000e+00 : f32
    %132 = vector.broadcast %cst_92 : f32 to vector<2x128xf32>
    %133 = arith.select %115, %113, %132 : vector<2x128xi1>, vector<2x128xf32>
    %134 = arith.addf %131, %133 : vector<2x128xf32>
    %c3_93 = arith.constant 3 : index
    %c0_94 = arith.constant 0 : index
    %c0_95 = arith.constant 0 : index
    %135 = vector.load %arg10[%c3_93, %c0_94, %c0_95] : memref<4x2x128xf32, #tpu.memory_space<vmem>>, vector<1x2x128xf32>
    %136 = vector.shape_cast %135 : vector<1x2x128xf32> to vector<2x128xf32>
    %137 = vector.shape_cast %134 : vector<2x128xf32> to vector<1x2x128xf32>
    tpu.vector_store %arg10[%c3_93, %c0_94, %c0_95], %137 {strides = array<i32>} : memref<4x2x128xf32, #tpu.memory_space<vmem>>, vector<1x2x128xf32>,
    %c0_i32_96 = arith.constant 0 : i32
    %138 = arith.cmpi eq, %arg2, %c0_i32_96 : i32
    %139 = arith.extui %138 : i1 to i32
    %c0_i32_97 = arith.constant 0 : i32
    %140 = arith.cmpi ne, %139, %c0_i32_97 : i32
    scf.if %140 {
      %c0_98 = arith.constant 0 : index
      %c0_99 = arith.constant 0 : index
      %c0_100 = arith.constant 0 : index
      %141 = vector.load %arg9[%c0_98, %c0_99, %c0_100] : memref<4x2x128xf32, #tpu.memory_space<vmem>>, vector<1x2x128xf32>
      %142 = vector.shape_cast %141 : vector<1x2x128xf32> to vector<2x128xf32>
      %cst_101 = arith.constant dense<0.000000e+00> : vector<128xf32>
      %143 = vector.multi_reduction <add>, %142, %cst_101 [0] : vector<2x128xf32> to vector<128xf32>
      %144 = vector.shape_cast %143 : vector<128xf32> to vector<1x128xf32>
      %c1_102 = arith.constant 1 : index
      %c0_103 = arith.constant 0 : index
      %c0_104 = arith.constant 0 : index
      %145 = vector.load %arg9[%c1_102, %c0_103, %c0_104] : memref<4x2x128xf32, #tpu.memory_space<vmem>>, vector<1x2x128xf32>
      %146 = vector.shape_cast %145 : vector<1x2x128xf32> to vector<2x128xf32>
      %cst_105 = arith.constant dense<0.000000e+00> : vector<128xf32>
      %147 = vector.multi_reduction <add>, %146, %cst_105 [0] : vector<2x128xf32> to vector<128xf32>
      %148 = vector.shape_cast %147 : vector<128xf32> to vector<1x128xf32>
      %c2_106 = arith.constant 2 : index
      %c0_107 = arith.constant 0 : index
      %c0_108 = arith.constant 0 : index
      %149 = vector.load %arg9[%c2_106, %c0_107, %c0_108] : memref<4x2x128xf32, #tpu.memory_space<vmem>>, vector<1x2x128xf32>
      %150 = vector.shape_cast %149 : vector<1x2x128xf32> to vector<2x128xf32>
      %cst_109 = arith.constant dense<0.000000e+00> : vector<128xf32>
      %151 = vector.multi_reduction <add>, %150, %cst_109 [0] : vector<2x128xf32> to vector<128xf32>
      %152 = vector.shape_cast %151 : vector<128xf32> to vector<1x128xf32>
      %c3_110 = arith.constant 3 : index
      %c0_111 = arith.constant 0 : index
      %c0_112 = arith.constant 0 : index
      %153 = vector.load %arg9[%c3_110, %c0_111, %c0_112] : memref<4x2x128xf32, #tpu.memory_space<vmem>>, vector<1x2x128xf32>
      %154 = vector.shape_cast %153 : vector<1x2x128xf32> to vector<2x128xf32>
      %cst_113 = arith.constant dense<0.000000e+00> : vector<128xf32>
      %155 = vector.multi_reduction <add>, %154, %cst_113 [0] : vector<2x128xf32> to vector<128xf32>
      %156 = vector.shape_cast %155 : vector<128xf32> to vector<1x128xf32>
      %157 = tpu.concatenate %144, %148, %152, %156 in 0 : vector<1x128xf32>, vector<1x128xf32>, vector<1x128xf32>, vector<1x128xf32> -> vector<4x128xf32>
      %c0_114 = arith.constant 0 : index
      %c0_115 = arith.constant 0 : index
      %c0_116 = arith.constant 0 : index
      %c0_117 = arith.constant 0 : index
      %158 = vector.load %arg6[%c0_114, %c0_115, %c0_116, %c0_117] : memref<1x1x4x128xf32, #tpu.memory_space<vmem>>, vector<1x1x4x128xf32>
      %159 = vector.shape_cast %158 : vector<1x1x4x128xf32> to vector<4x128xf32>
      %160 = vector.shape_cast %157 : vector<4x128xf32> to vector<1x1x4x128xf32>
      tpu.vector_store %arg6[%c0_114, %c0_115, %c0_116, %c0_117], %160 {strides = array<i32>} : memref<1x1x4x128xf32, #tpu.memory_space<vmem>>, vector<1x1x4x128xf32>,
      %c0_118 = arith.constant 0 : index
      %c0_119 = arith.constant 0 : index
      %c0_120 = arith.constant 0 : index
      %161 = vector.load %arg10[%c0_118, %c0_119, %c0_120] : memref<4x2x128xf32, #tpu.memory_space<vmem>>, vector<1x2x128xf32>
      %162 = vector.shape_cast %161 : vector<1x2x128xf32> to vector<2x128xf32>
      %cst_121 = arith.constant dense<0.000000e+00> : vector<128xf32>
      %163 = vector.multi_reduction <add>, %162, %cst_121 [0] : vector<2x128xf32> to vector<128xf32>
      %164 = vector.shape_cast %163 : vector<128xf32> to vector<1x128xf32>
      %c1_122 = arith.constant 1 : index
      %c0_123 = arith.constant 0 : index
      %c0_124 = arith.constant 0 : index
      %165 = vector.load %arg10[%c1_122, %c0_123, %c0_124] : memref<4x2x128xf32, #tpu.memory_space<vmem>>, vector<1x2x128xf32>
      %166 = vector.shape_cast %165 : vector<1x2x128xf32> to vector<2x128xf32>
      %cst_125 = arith.constant dense<0.000000e+00> : vector<128xf32>
      %167 = vector.multi_reduction <add>, %166, %cst_125 [0] : vector<2x128xf32> to vector<128xf32>
      %168 = vector.shape_cast %167 : vector<128xf32> to vector<1x128xf32>
      %c2_126 = arith.constant 2 : index
      %c0_127 = arith.constant 0 : index
      %c0_128 = arith.constant 0 : index
      %169 = vector.load %arg10[%c2_126, %c0_127, %c0_128] : memref<4x2x128xf32, #tpu.memory_space<vmem>>, vector<1x2x128xf32>
      %170 = vector.shape_cast %169 : vector<1x2x128xf32> to vector<2x128xf32>
      %cst_129 = arith.constant dense<0.000000e+00> : vector<128xf32>
      %171 = vector.multi_reduction <add>, %170, %cst_129 [0] : vector<2x128xf32> to vector<128xf32>
      %172 = vector.shape_cast %171 : vector<128xf32> to vector<1x128xf32>
      %c3_130 = arith.constant 3 : index
      %c0_131 = arith.constant 0 : index
      %c0_132 = arith.constant 0 : index
      %173 = vector.load %arg10[%c3_130, %c0_131, %c0_132] : memref<4x2x128xf32, #tpu.memory_space<vmem>>, vector<1x2x128xf32>
      %174 = vector.shape_cast %173 : vector<1x2x128xf32> to vector<2x128xf32>
      %cst_133 = arith.constant dense<0.000000e+00> : vector<128xf32>
      %175 = vector.multi_reduction <add>, %174, %cst_133 [0] : vector<2x128xf32> to vector<128xf32>
      %176 = vector.shape_cast %175 : vector<128xf32> to vector<1x128xf32>
      %177 = tpu.concatenate %164, %168, %172, %176 in 0 : vector<1x128xf32>, vector<1x128xf32>, vector<1x128xf32>, vector<1x128xf32> -> vector<4x128xf32>
      %c0_134 = arith.constant 0 : index
      %c0_135 = arith.constant 0 : index
      %c0_136 = arith.constant 0 : index
      %c0_137 = arith.constant 0 : index
      %178 = vector.load %arg7[%c0_134, %c0_135, %c0_136, %c0_137] : memref<1x1x4x128xf32, #tpu.memory_space<vmem>>, vector<1x1x4x128xf32>
      %179 = vector.shape_cast %178 : vector<1x1x4x128xf32> to vector<4x128xf32>
      %180 = vector.shape_cast %177 : vector<4x128xf32> to vector<1x1x4x128xf32>
      tpu.vector_store %arg7[%c0_134, %c0_135, %c0_136, %c0_137], %180 {strides = array<i32>} : memref<1x1x4x128xf32, #tpu.memory_space<vmem>>, vector<1x1x4x128xf32>,
      %c0_138 = arith.constant 0 : index
      %c0_139 = arith.constant 0 : index
      %c0_140 = arith.constant 0 : index
      %181 = vector.load %arg11[%c0_138, %c0_139, %c0_140] : memref<4x2x128xf32, #tpu.memory_space<vmem>>, vector<1x2x128xf32>
      %182 = vector.shape_cast %181 : vector<1x2x128xf32> to vector<2x128xf32>
      %cst_141 = arith.constant dense<0.000000e+00> : vector<128xf32>
      %183 = vector.multi_reduction <add>, %182, %cst_141 [0] : vector<2x128xf32> to vector<128xf32>
      %184 = vector.shape_cast %183 : vector<128xf32> to vector<1x128xf32>
      %c1_142 = arith.constant 1 : index
      %c0_143 = arith.constant 0 : index
      %c0_144 = arith.constant 0 : index
      %185 = vector.load %arg11[%c1_142, %c0_143, %c0_144] : memref<4x2x128xf32, #tpu.memory_space<vmem>>, vector<1x2x128xf32>
      %186 = vector.shape_cast %185 : vector<1x2x128xf32> to vector<2x128xf32>
      %cst_145 = arith.constant dense<0.000000e+00> : vector<128xf32>
      %187 = vector.multi_reduction <add>, %186, %cst_145 [0] : vector<2x128xf32> to vector<128xf32>
      %188 = vector.shape_cast %187 : vector<128xf32> to vector<1x128xf32>
      %c2_146 = arith.constant 2 : index
      %c0_147 = arith.constant 0 : index
      %c0_148 = arith.constant 0 : index
      %189 = vector.load %arg11[%c2_146, %c0_147, %c0_148] : memref<4x2x128xf32, #tpu.memory_space<vmem>>, vector<1x2x128xf32>
      %190 = vector.shape_cast %189 : vector<1x2x128xf32> to vector<2x128xf32>
      %cst_149 = arith.constant dense<0.000000e+00> : vector<128xf32>
      %191 = vector.multi_reduction <add>, %190, %cst_149 [0] : vector<2x128xf32> to vector<128xf32>
      %192 = vector.shape_cast %191 : vector<128xf32> to vector<1x128xf32>
      %c3_150 = arith.constant 3 : index
      %c0_151 = arith.constant 0 : index
      %c0_152 = arith.constant 0 : index
      %193 = vector.load %arg11[%c3_150, %c0_151, %c0_152] : memref<4x2x128xf32, #tpu.memory_space<vmem>>, vector<1x2x128xf32>
      %194 = vector.shape_cast %193 : vector<1x2x128xf32> to vector<2x128xf32>
      %cst_153 = arith.constant dense<0.000000e+00> : vector<128xf32>
      %195 = vector.multi_reduction <add>, %194, %cst_153 [0] : vector<2x128xf32> to vector<128xf32>
      %196 = vector.shape_cast %195 : vector<128xf32> to vector<1x128xf32>
      %197 = tpu.concatenate %184, %188, %192, %196 in 0 : vector<1x128xf32>, vector<1x128xf32>, vector<1x128xf32>, vector<1x128xf32> -> vector<4x128xf32>
      %c0_154 = arith.constant 0 : index
      %c0_155 = arith.constant 0 : index
      %c0_156 = arith.constant 0 : index
      %c0_157 = arith.constant 0 : index
      %198 = vector.load %arg8[%c0_154, %c0_155, %c0_156, %c0_157] : memref<1x1x4x128xf32, #tpu.memory_space<vmem>>, vector<1x1x4x128xf32>
      %199 = vector.shape_cast %198 : vector<1x1x4x128xf32> to vector<4x128xf32>
      %200 = vector.shape_cast %197 : vector<4x128xf32> to vector<1x1x4x128xf32>
      tpu.vector_store %arg8[%c0_154, %c0_155, %c0_156, %c0_157], %200 {strides = array<i32>} : memref<1x1x4x128xf32, #tpu.memory_space<vmem>>, vector<1x1x4x128xf32>,
    } else {
    }
    return
  }
  func.func @transform_0(%arg0: i32, %arg1: i32, %arg2: i32, %arg3: memref<2xi32, #tpu.memory_space<smem>>) -> (i32, i32, i32, i32) {
    %c1_i32 = arith.constant 1 : i32
    %0 = arith.muli %arg1, %c1_i32 : i32
    %1 = arith.addi %0, %arg2 : i32
    %c0_i32 = arith.constant 0 : i32
    %c0_i32_0 = arith.constant 0 : i32
    %c0_i32_1 = arith.constant 0 : i32
    return %arg0, %c0_i32, %1, %c0_i32_0 : i32, i32, i32, i32
  }
  func.func @transform_1(%arg0: i32, %arg1: i32, %arg2: i32, %arg3: memref<2xi32, #tpu.memory_space<smem>>) -> (i32, i32, i32) {
    %c1_i32 = arith.constant 1 : i32
    %0 = arith.muli %arg1, %c1_i32 : i32
    %1 = arith.addi %0, %arg2 : i32
    %c0_i32 = arith.constant 0 : i32
    %c0_i32_0 = arith.constant 0 : i32
    return %arg0, %1, %c0_i32 : i32, i32, i32
  }
  func.func @transform_2(%arg0: i32, %arg1: i32, %arg2: i32, %arg3: memref<2xi32, #tpu.memory_space<smem>>) -> (i32, i32, i32, i32) {
    %c0_i32 = arith.constant 0 : i32
    %c0_i32_0 = arith.constant 0 : i32
    %c0_i32_1 = arith.constant 0 : i32
    return %arg0, %arg1, %c0_i32, %c0_i32_0 : i32, i32, i32, i32
  }
  func.func @transform_3(%arg0: i32, %arg1: i32, %arg2: i32, %arg3: memref<2xi32, #tpu.memory_space<smem>>) -> (i32, i32, i32, i32) {
    %c0_i32 = arith.constant 0 : i32
    %c0_i32_0 = arith.constant 0 : i32
    %c0_i32_1 = arith.constant 0 : i32
    return %arg0, %arg1, %c0_i32, %c0_i32_0 : i32, i32, i32, i32
  }
  func.func @transform_4(%arg0: i32, %arg1: i32, %arg2: i32, %arg3: memref<2xi32, #tpu.memory_space<smem>>) -> (i32, i32, i32, i32) {
    %c0_i32 = arith.constant 0 : i32
    %c0_i32_0 = arith.constant 0 : i32
    %c0_i32_1 = arith.constant 0 : i32
    return %arg0, %arg1, %c0_i32, %c0_i32_0 : i32, i32, i32, i32
  }
}

</mosaic_0001>

<llo_original>
// kernel: tpu_custom_call.1
$region0: #{tpu_custom_call.1}
  #allocation0 [shape = 'u32[]', space=smem, size = 0x4, offset = 0x4, fixed_abs, tag = 'smem constant byte address 0x4 - core index']
  #allocation1 [shape = 'u32[144,128]{1,0:T(1,128)}', space=vmem, size = 0x12000, scoped, tag = 'internal scratch']
  #allocation2 [shape = 'f32[4,2,128]{2,1,0:T(2,128)}', space=vmem, size = 0x1000, scoped, tag = 'scratch operand']
  #allocation3 [shape = 'f32[4,2,128]{2,1,0:T(2,128)}', space=vmem, size = 0x1000, scoped, tag = 'scratch operand']
  #allocation4 [shape = 'f32[4,2,128]{2,1,0:T(2,128)}', space=vmem, size = 0x1000, scoped, tag = 'scratch operand']
  #allocation5 [shape = 's32[1]{0}', space=sflag, size = 0x4, scoped, tag = 'scoped memory for tpu_custom_call.1']
  #allocation6 [shape = 'u8[512]{0}', space=smem, size = 0x200, scoped, tag = 'prefetched SMEM operand 0']
  %s0 = inlined_call_operand.hbm [shape: s32[2], index: 0, kind: input, shape index: {}]
  %s1 = inlined_call_operand.hbm [shape: f32[2,4,2,128], index: 1, kind: input, shape index: {}]
  %s2 = inlined_call_operand.vmem [shape: s32[2,2,128], index: 2, kind: input, shape index: {}]
  %s3 = inlined_call_operand.hbm [shape: f32[2,1,4,128], index: 3, kind: output, shape index: {0}]
  %s4 = inlined_call_operand.hbm [shape: f32[2,1,4,128], index: 4, kind: output, shape index: {1}]
  %s5 = inlined_call_operand.hbm [shape: f32[2,1,4,128], index: 5, kind: output, shape index: {2}]
  %6 = xla_tuple %s3, %s4, %s5
  %s7 = sld [smem:[#allocation0]]
  $region69: #{tpu_custom_call.1} parent=0
    _
  %s9 = ssub.s32 1, %s7
  %s10 = scalar_select 0, %s9, %s7
  %12 = dma.hbm_to_smem %s0, 16, [#allocation6], [#allocation5]
  %13 = dma.done [#allocation5], 16
  %14 = sfence
  $region1: #{tpu_custom_call.1} parent=0
    #allocation7 [shape = 'u8[8192]{0}', space=vmem, size = 0x2000, scoped, tag = 'input window, operand 1']
    #allocation8 [shape = 's32[2]{0}', space=sflag, size = 0x8, scoped, tag = 'scoped memory for tpu_custom_call.1']
    #allocation9 [shape = 's32[2]{0}', space=sflag, size = 0x8, scoped, tag = 'scoped memory for tpu_custom_call.1']
    #allocation10 [shape = 'u8[4096]{0}', space=vmem, size = 0x1000, scoped, tag = 'output window, operand 0']
    #allocation11 [shape = 'u8[4096]{0}', space=vmem, size = 0x1000, scoped, tag = 'output window, operand 1']
    #allocation12 [shape = 's32[2]{0}', space=sflag, size = 0x8, scoped, tag = 'scoped memory for tpu_custom_call.1']
    #allocation13 [shape = 'u8[4096]{0}', space=vmem, size = 0x1000, scoped, tag = 'output window, operand 2']
    %15 = vsyncpa [#allocation8], 0
    %s16 = scalar_lea.sflag [#allocation8], 1
    %17 = vsyncpa %s16, 0
    %18 = vsyncpa [#allocation9], 0
    %s19 = scalar_lea.sflag [#allocation9], 1
    %20 = vsyncpa %s19, 0
    %21 = vsyncpa [#allocation12], 0
    %s22 = scalar_lea.sflag [#allocation12], 1
    %23 = vsyncpa %s22, 0
    loop: start=0, step=1, limit=4
    $region2: #{tpu_custom_call.1} parent=1 // loop_pre_header
      _
    $region3: #{tpu_custom_call.1} parent=1 // loop_header
      %s25 = sphi 0, %s29
      %p26 = scmp.ge.s32.totalorder %s25, 4
      %s32 = sphi 0, %s51
      %s33 = sphi 0, %s47
      %s34 = sphi 0, %s43
      %s35 = sphi 0, %s32
      %s36 = sphi 0, %s33
      %s37 = sphi 0, %s34
      %s38 = sphi 0, %s35
      %s39 = sphi 0, %s36
      %s40 = sphi 0, %s37
      %s58 = sphi 0, %s60
      %s61 = sphi 0, %s58
      %s62 = sphi 0, %s61
      %s78 = sphi 0, %s62
      %s88 = sphi 0, %s90
      %s91 = sphi 0, %s88
      %s92 = sphi 0, %s91
      %s108 = sphi 0, %s92
      %s116 = sphi 0, %s118
      %s119 = sphi 0, %s116
      %s120 = sphi 0, %s119
      %s136 = sphi 0, %s120
      %s144 = sphi 0, %s146
      %s147 = sphi 0, %s144
      %s148 = sphi 0, %s147
      %s164 = sphi 0, %s148
      %s172 = sphi 0, %s174
      %s175 = sphi 0, %s172
      %s176 = sphi 0, %s175
      %s192 = sphi 0, %s176
    $region4: #{tpu_custom_call.1} parent=1 // loop_header_branch
      %28 = sbr.rel (%p26) target = $region8
    $region5: #{tpu_custom_call.1} parent=1 // loop_body
      %s30 = ssub.s32 %s25, 1
      %s31 = ssub.s32 %s25, 2
      %s41 = sadd.s32 1, %s34
      %p42 = scmp.ge.s32.totalorder %s41, 1
      %s43 = scalar_select %p42, 0, %s41
      %s44 = sadd.s32 1, %s33
      %s45 = scalar_select %p42, %s44, %s33
      %p46 = scmp.ge.s32.totalorder %s45, 1
      %s47 = scalar_select %p46, 0, %s45
      %s48 = sadd.s32 1, %s32
      %s49 = scalar_select %p46, %s48, %s32
      %p50 = scmp.ge.s32.totalorder %s49, 2
      %s51 = scalar_select %p50, 0, %s49
      %s52 = sadd.s32 %s33, %s34
      %s53 = sadd.s32 %s47, %s43
      %s54 = ssub.s32 %s32, %s51
      %s55 = ssub.s32 %s52, %s53
      %s56 = sor.u32 %s54, %s55
      %p57 = scmp.eq.s32.totalorder %s56, 0
      %s59 = sadd.s32 %s58, 1
      %s60 = scalar_select %p57, %s58, %s59
      %p63 = pneg %p57
      %p64 = scmp.eq.s32.totalorder %s25, 1
      %p65 = por %p63, %p64
      %p66 = scmp.ne.s32.totalorder %s58, %s61
      %p67 = scmp.eq.s32.totalorder %s25, 0
      %p68 = por %p66, %p67
      %p69 = scmp.ne.s32.totalorder %s58, %s61
      %p70 = scmp.eq.s32.totalorder %s30, 1
      %p71 = por %p69, %p70
      %p72 = scmp.ne.s32.totalorder %s61, %s62
      %p73 = scmp.eq.s32.totalorder %s30, 0
      %p74 = por %p72, %p73
      %p75 = scmp.ne.s32.totalorder %s61, %s62
      %p76 = scmp.eq.s32.totalorder %s31, 1
      %p77 = por %p75, %p76
      %p79 = scmp.ne.s32.totalorder %s62, %s78
      %p80 = scmp.eq.s32.totalorder %s31, 0
      %p81 = por %p79, %p80
      %s82 = sadd.s32 %s33, %s34
      %s83 = sadd.s32 %s47, %s43
      %s84 = ssub.s32 %s32, %s51
      %s85 = ssub.s32 %s82, %s83
      %s86 = sor.u32 %s84, %s85
      %p87 = scmp.eq.s32.totalorder %s86, 0
      %s89 = sadd.s32 %s88, 1
      %s90 = scalar_select %p87, %s88, %s89
      %p93 = pneg %p87
      %p94 = scmp.eq.s32.totalorder %s25, 1
      %p95 = por %p93, %p94
      %p96 = scmp.ne.s32.totalorder %s88, %s91
      %p97 = scmp.eq.s32.totalorder %s25, 0
      %p98 = por %p96, %p97
      %p99 = scmp.ne.s32.totalorder %s88, %s91
      %p100 = scmp.eq.s32.totalorder %s30, 1
      %p101 = por %p99, %p100
      %p102 = scmp.ne.s32.totalorder %s91, %s92
      %p103 = scmp.eq.s32.totalorder %s30, 0
      %p104 = por %p102, %p103
      %p105 = scmp.ne.s32.totalorder %s91, %s92
      %p106 = scmp.eq.s32.totalorder %s31, 1
      %p107 = por %p105, %p106
      %p109 = scmp.ne.s32.totalorder %s92, %s108
      %p110 = scmp.eq.s32.totalorder %s31, 0
      %p111 = por %p109, %p110
      %s112 = ssub.s32 %s32, %s51
      %s113 = ssub.s32 %s33, %s47
      %s114 = sor.u32 %s112, %s113
      %p115 = scmp.eq.s32.totalorder %s114, 0
      %s117 = sadd.s32 %s116, 1
      %s118 = scalar_select %p115, %s116, %s117
      %p121 = pneg %p115
      %p122 = scmp.eq.s32.totalorder %s25, 1
      %p123 = por %p121, %p122
      %p124 = scmp.ne.s32.totalorder %s116, %s119
      %p125 = scmp.eq.s32.totalorder %s25, 0
      %p126 = por %p124, %p125
      %p127 = scmp.ne.s32.totalorder %s116, %s119
      %p128 = scmp.eq.s32.totalorder %s30, 1
      %p129 = por %p127, %p128
      %p130 = scmp.ne.s32.totalorder %s119, %s120
      %p131 = scmp.eq.s32.totalorder %s30, 0
      %p132 = por %p130, %p131
      %p133 = scmp.ne.s32.totalorder %s119, %s120
      %p134 = scmp.eq.s32.totalorder %s31, 1
      %p135 = por %p133, %p134
      %p137 = scmp.ne.s32.totalorder %s120, %s136
      %p138 = scmp.eq.s32.totalorder %s31, 0
      %p139 = por %p137, %p138
      %s140 = ssub.s32 %s32, %s51
      %s141 = ssub.s32 %s33, %s47
      %s142 = sor.u32 %s140, %s141
      %p143 = scmp.eq.s32.totalorder %s142, 0
      %s145 = sadd.s32 %s144, 1
      %s146 = scalar_select %p143, %s144, %s145
      %p149 = pneg %p143
      %p150 = scmp.eq.s32.totalorder %s25, 1
      %p151 = por %p149, %p150
      %p152 = scmp.ne.s32.totalorder %s144, %s147
      %p153 = scmp.eq.s32.totalorder %s25, 0
      %p154 = por %p152, %p153
      %p155 = scmp.ne.s32.totalorder %s144, %s147
      %p156 = scmp.eq.s32.totalorder %s30, 1
      %p157 = por %p155, %p156
      %p158 = scmp.ne.s32.totalorder %s147, %s148
      %p159 = scmp.eq.s32.totalorder %s30, 0
      %p160 = por %p158, %p159
      %p161 = scmp.ne.s32.totalorder %s147, %s148
      %p162 = scmp.eq.s32.totalorder %s31, 1
      %p163 = por %p161, %p162
      %p165 = scmp.ne.s32.totalorder %s148, %s164
      %p166 = scmp.eq.s32.totalorder %s31, 0
      %p167 = por %p165, %p166
      %s168 = ssub.s32 %s32, %s51
      %s169 = ssub.s32 %s33, %s47
      %s170 = sor.u32 %s168, %s169
      %p171 = scmp.eq.s32.totalorder %s170, 0
      %s173 = sadd.s32 %s172, 1
      %s174 = scalar_select %p171, %s172, %s173
      %p177 = pneg %p171
      %p178 = scmp.eq.s32.totalorder %s25, 1
      %p179 = por %p177, %p178
      %p180 = scmp.ne.s32.totalorder %s172, %s175
      %p181 = scmp.eq.s32.totalorder %s25, 0
      %p182 = por %p180, %p181
      %p183 = scmp.ne.s32.totalorder %s172, %s175
      %p184 = scmp.eq.s32.totalorder %s30, 1
      %p185 = por %p183, %p184
      %p186 = scmp.ne.s32.totalorder %s175, %s176
      %p187 = scmp.eq.s32.totalorder %s30, 0
      %p188 = por %p186, %p187
      %p189 = scmp.ne.s32.totalorder %s175, %s176
      %p190 = scmp.eq.s32.totalorder %s31, 1
      %p191 = por %p189, %p190
      %p193 = scmp.ne.s32.totalorder %s176, %s192
      %p194 = scmp.eq.s32.totalorder %s31, 0
      %p195 = por %p193, %p194
      %p196 = scmp.le.s32.totalorder 1, %s25
      %p197 = scmp.lt.s32.totalorder %s25, 3
      %p198 = pnand %p196, %p197
      %p199 = pneg %p198
      // Predicated region
      $region9: #{tpu_custom_call.1} parent=5 // pred_check
        _
      $region10: #{tpu_custom_call.1} parent=5 // pred_check_branch
        %201 = sbr.rel (%p198) target = $region12
      $region11: #{tpu_custom_call.1} parent=5 // pred_region
        %s202 = ssub.s32 %s25, 1
      $region12: #{tpu_custom_call.1} parent=5 // pred_fallthru
        _
      %p203 = scmp.lt.s32.totalorder %s25, 2
      // Predicated region
      $region13: #{tpu_custom_call.1} parent=5 // pred_check
        %p204 = pneg %p203
      $region14: #{tpu_custom_call.1} parent=5 // pred_check_branch
        %206 = sbr.rel (%p204) target = $region16
      $region15: #{tpu_custom_call.1} parent=5 // pred_region
        // Predicated region
        $region17: #{tpu_custom_call.1} parent=15 // pred_check
          %p207 = pneg %p68
        $region18: #{tpu_custom_call.1} parent=15 // pred_check_branch
          %209 = sbr.rel (%p207) target = $region20
        $region19: #{tpu_custom_call.1} parent=15 // pred_region
          %s210 = sand.u32 %s58, 1
          %s211 = scalar_lea.sflag [#allocation8], %s210
          %s212 = sand.u32 %s58, 1
          %s213 = smul.addr %s212, 8
          %s214 = scalar_lea.vmem [#allocation7], %s213
          %s215 = sadd.s32 %s33, %s34
          %s217 = ssub.s32 128, 128
          %218 = vsyncadd %s211, %s217
          %s219 = smul.addr %s32, 4
          %s220 = sadd.s32 %s215, %s219
          %s221 = smul.addr %s220, 32
          %s222 = scalar_lea.hbm %s1, %s221
          %s223 = sshll.u32 %s214, 4
          %s224 = int_to_ptr.vmem [resolvable:$true] %s223
          %229 = dma.hbm_to_vmem [thread:$0]  %s222, 128, %s224, %s211, 32, 32, 2
        $region20: #{tpu_custom_call.1} parent=15 // pred_fallthru
          _
        // Predicated region
        $region21: #{tpu_custom_call.1} parent=15 // pred_check
          %p230 = pneg %p98
        $region22: #{tpu_custom_call.1} parent=15 // pred_check_branch
          %232 = sbr.rel (%p230) target = $region24
        $region23: #{tpu_custom_call.1} parent=15 // pred_region
          %s233 = sadd.s32 %s33, %s34
          %p234 = scmp.lt.s32.totalorder %s32, 1
          %s235 = scalar_select %p234, %s32, 1
          %p236 = scmp.lt.s32.totalorder %s233, 0
          %s237 = scalar_select %p236, %s233, 0
          %s238 = sadd.s32 %s237, %s235
          %s239 = smul.addr %s238, 2
          %s240 = scalar_lea.vmem %s2, %s239
          %s241 = sadd.s32 %s33, %s34
        $region24: #{tpu_custom_call.1} parent=15 // pred_fallthru
          _
      $region16: #{tpu_custom_call.1} parent=5 // pred_fallthru
        _
      %p242 = scmp.le.s32.totalorder 1, %s25
      %p243 = scmp.lt.s32.totalorder %s25, 3
      %p244 = pnand %p242, %p243
      %p245 = pneg %p244
      // Predicated region
      $region25: #{tpu_custom_call.1} parent=5 // pred_check
        _
      $region26: #{tpu_custom_call.1} parent=5 // pred_check_branch
        %247 = sbr.rel (%p244) target = $region28
      $region27: #{tpu_custom_call.1} parent=5 // pred_region
        %s248 = ssub.s32 %s25, 1
        %s249 = sand.u32 %s61, 1
        %s250 = scalar_lea.sflag [#allocation8], %s249
        %s251 = sand.u32 %s61, 1
        %s252 = smul.addr %s251, 8
        %s253 = scalar_lea.vmem [#allocation7], %s252
        // Predicated region
        $region29: #{tpu_custom_call.1} parent=27 // pred_check
          %p254 = pneg %p74
        $region30: #{tpu_custom_call.1} parent=27 // pred_check_branch
          %256 = sbr.rel (%p254) target = $region32
        $region31: #{tpu_custom_call.1} parent=27 // pred_region
          %257 = dma.done %s250, 128
        $region32: #{tpu_custom_call.1} parent=27 // pred_fallthru
          _
        %s258 = sand.u32 %s61, 1
        %s259 = scalar_lea.sflag [#allocation8], %s258
        %s260 = sand.u32 %s61, 1
        %s261 = smul.addr %s260, 8
        %s262 = scalar_lea.vmem [#allocation7], %s261
        %p263 = pneg %p74
        %p264 = pneg %p71
        %s265 = sadd.s32 %s36, %s37
        %p266 = scmp.lt.s32.totalorder %s35, 1
        %s267 = scalar_select %p266, %s35, 1
        %p268 = scmp.lt.s32.totalorder %s265, 0
        %s269 = scalar_select %p268, %s265, 0
        %s270 = sadd.s32 %s269, %s267
        %s271 = smul.addr %s270, 2
        %s272 = scalar_lea.vmem %s2, %s271
        %p273 = pneg %p104
        %p274 = pneg %p101
        %p275 = pneg %p132
        %p276 = pneg %p129
        %s277 = sand.u32 %s119, 1
        %s278 = scalar_lea.sflag [#allocation9], %s277
        %s279 = sand.u32 %s119, 1
        %s280 = smul.addr %s279, 4
        %s281 = scalar_lea.vmem [#allocation10], %s280
        %p282 = pneg %p160
        %p283 = pneg %p157
        %s284 = sand.u32 %s30, 1
        %s285 = scalar_lea.sflag [#allocation12], %s284
        %s286 = sand.u32 %s147, 1
        %s287 = smul.addr %s286, 4
        %s288 = scalar_lea.vmem [#allocation11], %s287
        %p289 = pneg %p188
        %p290 = pneg %p185
        %s291 = sand.u32 %s30, 1
        %s292 = scalar_lea.sflag [#allocation12], %s291
        %s293 = sand.u32 %s175, 1
        %s294 = smul.addr %s293, 4
        %s295 = scalar_lea.vmem [#allocation13], %s294
        %s296 = sadd.s32 %s36, %s37
        %s297 = sadd.s32 %s36, %s37
        %p298 = scmp.lt.s32.totalorder %s35, 1
        %s299 = scalar_select %p298, %s35, 1
        %p300 = scmp.lt.s32.totalorder %s297, 0
        %s301 = scalar_select %p300, %s297, 0
        %s302 = sadd.s32 %s301, %s299
        %s303 = smul.addr %s302, 2
        %s304 = scalar_lea.vmem %s2, %s303
        %s305 = sadd.s32 %s36, %s37
        %p306 = scmp.eq.s32.totalorder %s37, 0
        // Predicated region
        $region33: #{tpu_custom_call.1} parent=27 // pred_check
          %p307 = pneg %p306
        $region34: #{tpu_custom_call.1} parent=27 // pred_check_branch
          %309 = sbr.rel (%p307) target = $region36
        $region35: #{tpu_custom_call.1} parent=27 // pred_region
          %310 = vst [vmem:[#allocation2] sm:$0x3] 0.0
          %311 = vst [vmem:[#allocation2 + $0x2] sm:$0x3] 0.0
          %312 = vst [vmem:[#allocation2 + $0x4] sm:$0x3] 0.0
          %313 = vst [vmem:[#allocation2 + $0x6] sm:$0x3] 0.0
          %314 = vst [vmem:[#allocation3] sm:$0x3] 0.0
          %315 = vst [vmem:[#allocation3 + $0x2] sm:$0x3] 0.0
          %316 = vst [vmem:[#allocation3 + $0x4] sm:$0x3] 0.0
          %317 = vst [vmem:[#allocation3 + $0x6] sm:$0x3] 0.0
          %318 = vst [vmem:[#allocation4] sm:$0x3] 0.0
          %319 = vst [vmem:[#allocation4 + $0x2] sm:$0x3] 0.0
          %320 = vst [vmem:[#allocation4 + $0x4] sm:$0x3] 0.0
          %321 = vst [vmem:[#allocation4 + $0x6] sm:$0x3] 0.0
        $region36: #{tpu_custom_call.1} parent=27 // pred_fallthru
          _
        %v322 = vld [vmem:[%s304] sm:$0x3]
        %s323 = sld [smem:[#allocation6]]
        %s324 = sld [smem:[#allocation6 + $0x1]]
        %p325 = scmp.gt.s32.totalorder %s323, 0
        %vm326 = vcmp.eq.s32.totalorder %v322, 255
        %s327 = scalar_select %p325, 1, 0
        %v328 = vstv %s327
        %vm329 = vcmp.eq.s32.totalorder %v328, 1
        %vm330 = vmand %vm329, %vm326
        %v331 = vstv %s324
        %v332 = vsel %vm330, %v331, %v322
        %v333 = vld [vmem:[%s253] sm:$0x3]
        %s334 = scalar_lea.vmem %s253, 2 [#allocation7]
        %v335 = vld [vmem:[%s334] sm:$0x3]
        %s336 = scalar_lea.vmem %s253, 4 [#allocation7]
        %v337 = vld [vmem:[%s336] sm:$0x3]
        %s338 = scalar_lea.vmem %s253, 6 [#allocation7]
        %v339 = vld [vmem:[%s338] sm:$0x3]
        %v340 = vmax.f32 %v333, %v335
        %v341 = vmax.f32 %v340, %v337
        %v342 = vmax.f32 %v341, %v339
        %v343 = vsub.f32 %v333, %v342
        %v344 = vmul.f32 %v343, 1.442695
        %v345 = vpow.pop %v344
        %v346 = vsub.f32 %v335, %v342
        %v347 = vmul.f32 %v346, 1.442695
        %v348 = vpow.pop %v347
        %v349 = vadd.f32 %v345, %v348
        %v350 = vsub.f32 %v337, %v342
        %v351 = vmul.f32 %v350, 1.442695
        %v352 = vpow.pop %v351
        %v353 = vadd.f32 %v349, %v352
        %v354 = vsub.f32 %v339, %v342
        %v355 = vmul.f32 %v354, 1.442695
        %v356 = vpow.pop %v355
        %v357 = vadd.f32 %v353, %v356
        %v358 = vrcp.pop %v357
        %v359 = vmul.f32 1.0, %v358
        %v360 = vmul.f32 %v345, %v359
        %vm361 = vcmp.eq.s32.totalorder %v332, 0
        %v362 = vld [vmem:[#allocation2] sm:$0x3]
        %v363 = vsel %vm361, 1, 0
        %v364 = vcvt.s32.f32 %v363
        %v365 = vadd.f32 %v362, %v364
        %366 = vst [vmem:[#allocation2] sm:$0x3] %v365
        %v367 = vld [vmem:[#allocation4] sm:$0x3]
        %v368 = vadd.f32 %v367, %v360
        %369 = vst [vmem:[#allocation4] sm:$0x3] %v368
        %v370 = vld [vmem:[#allocation3] sm:$0x3]
        %v371 = vsel %vm361, %v360, 0.0
        %v372 = vadd.f32 %v370, %v371
        %373 = vst [vmem:[#allocation3] sm:$0x3] %v372
        %v374 = vmul.f32 %v348, %v359
        %vm375 = vcmp.eq.s32.totalorder %v332, 1
        %s376 = scalar_lea.vmem [#allocation2], 2
        %v377 = vld [vmem:[%s376] sm:$0x3]
        %v378 = vsel %vm375, 1, 0
        %v379 = vcvt.s32.f32 %v378
        %v380 = vadd.f32 %v377, %v379
        %381 = vst [vmem:[%s376] sm:$0x3] %v380
        %s382 = scalar_lea.vmem [#allocation4], 2
        %v383 = vld [vmem:[%s382] sm:$0x3]
        %v384 = vadd.f32 %v383, %v374
        %385 = vst [vmem:[%s382] sm:$0x3] %v384
        %s386 = scalar_lea.vmem [#allocation3], 2
        %v387 = vld [vmem:[%s386] sm:$0x3]
        %v388 = vsel %vm375, %v374, 0.0
        %v389 = vadd.f32 %v387, %v388
        %390 = vst [vmem:[%s386] sm:$0x3] %v389
        %v391 = vmul.f32 %v352, %v359
        %vm392 = vcmp.eq.s32.totalorder %v332, 2
        %s393 = scalar_lea.vmem [#allocation2], 4
        %v394 = vld [vmem:[%s393] sm:$0x3]
        %v395 = vsel %vm392, 1, 0
        %v396 = vcvt.s32.f32 %v395
        %v397 = vadd.f32 %v394, %v396
        %398 = vst [vmem:[%s393] sm:$0x3] %v397
        %s399 = scalar_lea.vmem [#allocation4], 4
        %v400 = vld [vmem:[%s399] sm:$0x3]
        %v401 = vadd.f32 %v400, %v391
        %402 = vst [vmem:[%s399] sm:$0x3] %v401
        %s403 = scalar_lea.vmem [#allocation3], 4
        %v404 = vld [vmem:[%s403] sm:$0x3]
        %v405 = vsel %vm392, %v391, 0.0
        %v406 = vadd.f32 %v404, %v405
        %407 = vst [vmem:[%s403] sm:$0x3] %v406
        %v408 = vmul.f32 %v356, %v359
        %vm409 = vcmp.eq.s32.totalorder %v332, 3
        %s410 = scalar_lea.vmem [#allocation2], 6
        %v411 = vld [vmem:[%s410] sm:$0x3]
        %v412 = vsel %vm409, 1, 0
        %v413 = vcvt.s32.f32 %v412
        %v414 = vadd.f32 %v411, %v413
        %415 = vst [vmem:[%s410] sm:$0x3] %v414
        %s416 = scalar_lea.vmem [#allocation4], 6
        %v417 = vld [vmem:[%s416] sm:$0x3]
        %v418 = vadd.f32 %v417, %v408
        %419 = vst [vmem:[%s416] sm:$0x3] %v418
        %s420 = scalar_lea.vmem [#allocation3], 6
        %v421 = vld [vmem:[%s420] sm:$0x3]
        %v422 = vsel %vm409, %v408, 0.0
        %v423 = vadd.f32 %v421, %v422
        %424 = vst [vmem:[%s420] sm:$0x3] %v423
        // Predicated region
        $region37: #{tpu_custom_call.1} parent=27 // pred_check
          %p425 = pneg %p306
        $region38: #{tpu_custom_call.1} parent=27 // pred_check_branch
          %427 = sbr.rel (%p425) target = $region40
        $region39: #{tpu_custom_call.1} parent=27 // pred_region
          %v428 = vld [vmem:[#allocation2] sm:$0x3]
          %vm429 = vcmask 1041408
          %v430 = vsel %vm429, %v428, 0.0
          %v431 = vrot.slane %v430, 4
          %v432 = vadd.f32 %v430, %v431
          %v433 = vrot.slane %v432, 2
          %v434 = vadd.f32 %v432, %v433
          %v435 = vrot.slane %v434, 1
          %v436 = vadd.f32 %v434, %v435
          %v437 = vld [vmem:[%s376] sm:$0x3]
          %v438 = vsel %vm429, %v437, 0.0
          %v439 = vrot.slane %v438, 4
          %v440 = vadd.f32 %v438, %v439
          %v441 = vrot.slane %v440, 2
          %v442 = vadd.f32 %v440, %v441
          %v443 = vrot.slane %v442, 1
          %v444 = vadd.f32 %v442, %v443
          %v445 = vld [vmem:[%s393] sm:$0x3]
          %v446 = vsel %vm429, %v445, 0.0
          %v447 = vrot.slane %v446, 4
          %v448 = vadd.f32 %v446, %v447
          %v449 = vrot.slane %v448, 2
          %v450 = vadd.f32 %v448, %v449
          %v451 = vrot.slane %v450, 1
          %v452 = vadd.f32 %v450, %v451
          %v453 = vld [vmem:[%s410] sm:$0x3]
          %v454 = vsel %vm429, %v453, 0.0
          %v455 = vrot.slane %v454, 4
          %v456 = vadd.f32 %v454, %v455
          %v457 = vrot.slane %v456, 2
          %v458 = vadd.f32 %v456, %v457
          %v459 = vrot.slane %v458, 1
          %v460 = vadd.f32 %v458, %v459
          %vm461 = vcmask 1040384
          %v462 = vsel %vm461, %v436, %v444
          %v463 = vsel %vm429, %v462, %v452
          %vm464 = vcmask 1042432
          %v465 = vsel %vm464, %v463, %v460
          %466 = vst [vmem:[%s281] sm:$0xf] %v465
          %v467 = vld [vmem:[#allocation3] sm:$0x3]
          %v468 = vsel %vm429, %v467, 0.0
          %v469 = vrot.slane %v468, 4
          %v470 = vadd.f32 %v468, %v469
          %v471 = vrot.slane %v470, 2
          %v472 = vadd.f32 %v470, %v471
          %v473 = vrot.slane %v472, 1
          %v474 = vadd.f32 %v472, %v473
          %v475 = vld [vmem:[%s386] sm:$0x3]
          %v476 = vsel %vm429, %v475, 0.0
          %v477 = vrot.slane %v476, 4
          %v478 = vadd.f32 %v476, %v477
          %v479 = vrot.slane %v478, 2
          %v480 = vadd.f32 %v478, %v479
          %v481 = vrot.slane %v480, 1
          %v482 = vadd.f32 %v480, %v481
          %v483 = vld [vmem:[%s403] sm:$0x3]
          %v484 = vsel %vm429, %v483, 0.0
          %v485 = vrot.slane %v484, 4
          %v486 = vadd.f32 %v484, %v485
          %v487 = vrot.slane %v486, 2
          %v488 = vadd.f32 %v486, %v487
          %v489 = vrot.slane %v488, 1
          %v490 = vadd.f32 %v488, %v489
          %v491 = vld [vmem:[%s420] sm:$0x3]
          %v492 = vsel %vm429, %v491, 0.0
          %v493 = vrot.slane %v492, 4
          %v494 = vadd.f32 %v492, %v493
          %v495 = vrot.slane %v494, 2
          %v496 = vadd.f32 %v494, %v495
          %v497 = vrot.slane %v496, 1
          %v498 = vadd.f32 %v496, %v497
          %v499 = vsel %vm461, %v474, %v482
          %v500 = vsel %vm429, %v499, %v490
          %v501 = vsel %vm464, %v500, %v498
          %502 = vst [vmem:[%s288] sm:$0xf] %v501
          %v503 = vld [vmem:[#allocation4] sm:$0x3]
          %v504 = vsel %vm429, %v503, 0.0
          %v505 = vrot.slane %v504, 4
          %v506 = vadd.f32 %v504, %v505
          %v507 = vrot.slane %v506, 2
          %v508 = vadd.f32 %v506, %v507
          %v509 = vrot.slane %v508, 1
          %v510 = vadd.f32 %v508, %v509
          %v511 = vld [vmem:[%s382] sm:$0x3]
          %v512 = vsel %vm429, %v511, 0.0
          %v513 = vrot.slane %v512, 4
          %v514 = vadd.f32 %v512, %v513
          %v515 = vrot.slane %v514, 2
          %v516 = vadd.f32 %v514, %v515
          %v517 = vrot.slane %v516, 1
          %v518 = vadd.f32 %v516, %v517
          %v519 = vld [vmem:[%s399] sm:$0x3]
          %v520 = vsel %vm429, %v519, 0.0
          %v521 = vrot.slane %v520, 4
          %v522 = vadd.f32 %v520, %v521
          %v523 = vrot.slane %v522, 2
          %v524 = vadd.f32 %v522, %v523
          %v525 = vrot.slane %v524, 1
          %v526 = vadd.f32 %v524, %v525
          %v527 = vld [vmem:[%s416] sm:$0x3]
          %v528 = vsel %vm429, %v527, 0.0
          %v529 = vrot.slane %v528, 4
          %v530 = vadd.f32 %v528, %v529
          %v531 = vrot.slane %v530, 2
          %v532 = vadd.f32 %v530, %v531
          %v533 = vrot.slane %v532, 1
          %v534 = vadd.f32 %v532, %v533
          %v535 = vsel %vm461, %v510, %v518
          %v536 = vsel %vm429, %v535, %v526
          %v537 = vsel %vm464, %v536, %v534
          %538 = vst [vmem:[%s295] sm:$0xf] %v537
        $region40: #{tpu_custom_call.1} parent=27 // pred_fallthru
          _
        %s539 = sand.u32 %s119, 1
        %s540 = scalar_lea.sflag [#allocation9], %s539
        %s541 = sand.u32 %s119, 1
        %s542 = smul.addr %s541, 4
        %s543 = scalar_lea.vmem [#allocation10], %s542
        %s544 = sand.u32 %s30, 1
        %s545 = scalar_lea.sflag [#allocation12], %s544
        %s546 = sand.u32 %s147, 1
        %s547 = smul.addr %s546, 4
        %s548 = scalar_lea.vmem [#allocation11], %s547
        %s549 = sand.u32 %s30, 1
        %s550 = scalar_lea.sflag [#allocation12], %s549
        %s551 = sand.u32 %s175, 1
        %s552 = smul.addr %s551, 4
        %s553 = scalar_lea.vmem [#allocation13], %s552
        // Predicated region
        $region41: #{tpu_custom_call.1} parent=27 // pred_check
          %p554 = pneg %p129
        $region42: #{tpu_custom_call.1} parent=27 // pred_check_branch
          %556 = sbr.rel (%p554) target = $region44
        $region43: #{tpu_custom_call.1} parent=27 // pred_region
          %s558 = ssub.s32 64, 64
          %559 = vsyncadd %s540, %s558
          %s560 = sadd.s32 %s36, %s35
          %s561 = smul.addr %s560, 64
          %s562 = scalar_lea.hbm %s3, %s561
          %s564 = sshll.u32 %s543, 4
          %s565 = int_to_ptr.vmem [resolvable:$true] %s564
          %567 = dma.vmem_to_hbm [thread:$0]  %s565, 64, %s562, %s540
        $region44: #{tpu_custom_call.1} parent=27 // pred_fallthru
          _
        // Predicated region
        $region45: #{tpu_custom_call.1} parent=27 // pred_check
          %p568 = pneg %p157
        $region46: #{tpu_custom_call.1} parent=27 // pred_check_branch
          %570 = sbr.rel (%p568) target = $region48
        $region47: #{tpu_custom_call.1} parent=27 // pred_region
          %s572 = ssub.s32 64, 64
          %573 = vsyncadd %s545, %s572
          %s574 = sadd.s32 %s36, %s35
          %s575 = smul.addr %s574, 64
          %s576 = scalar_lea.hbm %s4, %s575
          %s578 = sshll.u32 %s548, 4
          %s579 = int_to_ptr.vmem [resolvable:$true] %s578
          %581 = dma.vmem_to_hbm [thread:$0]  %s579, 64, %s576, %s545
        $region48: #{tpu_custom_call.1} parent=27 // pred_fallthru
          _
        // Predicated region
        $region49: #{tpu_custom_call.1} parent=27 // pred_check
          %p582 = pneg %p185
        $region50: #{tpu_custom_call.1} parent=27 // pred_check_branch
          %584 = sbr.rel (%p582) target = $region52
        $region51: #{tpu_custom_call.1} parent=27 // pred_region
          %s586 = ssub.s32 64, 64
          %587 = vsyncadd %s550, %s586
          %s588 = sadd.s32 %s36, %s35
          %s589 = smul.addr %s588, 64
          %s590 = scalar_lea.hbm %s5, %s589
          %s592 = sshll.u32 %s553, 4
          %s593 = int_to_ptr.vmem [resolvable:$true] %s592
          %595 = dma.vmem_to_hbm [thread:$0]  %s593, 64, %s590, %s550
        $region52: #{tpu_custom_call.1} parent=27 // pred_fallthru
          _
      $region28: #{tpu_custom_call.1} parent=5 // pred_fallthru
        _
      %p596 = scmp.le.s32.totalorder 2, %s25
      // Predicated region
      $region53: #{tpu_custom_call.1} parent=5 // pred_check
        %p597 = pneg %p596
      $region54: #{tpu_custom_call.1} parent=5 // pred_check_branch
        %599 = sbr.rel (%p597) target = $region56
      $region55: #{tpu_custom_call.1} parent=5 // pred_region
        %s600 = ssub.s32 %s25, 2
        // Predicated region
        $region57: #{tpu_custom_call.1} parent=55 // pred_check
          %p601 = pneg %p135
        $region58: #{tpu_custom_call.1} parent=55 // pred_check_branch
          %603 = sbr.rel (%p601) target = $region60
        $region59: #{tpu_custom_call.1} parent=55 // pred_region
          %s604 = sand.u32 %s120, 1
          %s605 = scalar_lea.sflag [#allocation9], %s604
          %s606 = sand.u32 %s120, 1
          %s607 = smul.addr %s606, 4
          %s608 = scalar_lea.vmem [#allocation10], %s607
          %609 = dma.done %s605, 64
        $region60: #{tpu_custom_call.1} parent=55 // pred_fallthru
          _
        // Predicated region
        $region61: #{tpu_custom_call.1} parent=55 // pred_check
          %p610 = pneg %p163
        $region62: #{tpu_custom_call.1} parent=55 // pred_check_branch
          %612 = sbr.rel (%p610) target = $region64
        $region63: #{tpu_custom_call.1} parent=55 // pred_region
          %s613 = sand.u32 %s31, 1
          %s614 = scalar_lea.sflag [#allocation12], %s613
          %s615 = sand.u32 %s148, 1
          %s616 = smul.addr %s615, 4
          %s617 = scalar_lea.vmem [#allocation11], %s616
          %618 = dma.done %s614, 64
        $region64: #{tpu_custom_call.1} parent=55 // pred_fallthru
          _
        // Predicated region
        $region65: #{tpu_custom_call.1} parent=55 // pred_check
          %p619 = pneg %p191
        $region66: #{tpu_custom_call.1} parent=55 // pred_check_branch
          %621 = sbr.rel (%p619) target = $region68
        $region67: #{tpu_custom_call.1} parent=55 // pred_region
          %s622 = sand.u32 %s31, 1
          %s623 = scalar_lea.sflag [#allocation12], %s622
          %s624 = sand.u32 %s176, 1
          %s625 = smul.addr %s624, 4
          %s626 = scalar_lea.vmem [#allocation13], %s625
          %627 = dma.done %s623, 64
        $region68: #{tpu_custom_call.1} parent=55 // pred_fallthru
          _
      $region56: #{tpu_custom_call.1} parent=5 // pred_fallthru
        _
    $region6: #{tpu_custom_call.1} parent=1 // loop_footer
      %s29 = sadd.s32 1, %s25
    $region7: #{tpu_custom_call.1} parent=1 // loop_footer_branch
      %24 = sbr.rel target = $region3
    $region8: #{tpu_custom_call.1} parent=1 // loop_exit
      _
    %628 = vsyncpa [#allocation8], 1
    %s629 = scalar_lea.sflag [#allocation8], 1
    %630 = vsyncpa %s629, 1
    %631 = vsyncpa [#allocation9], 1
    %s632 = scalar_lea.sflag [#allocation9], 1
    %633 = vsyncpa %s632, 1
    %634 = vsyncpa [#allocation12], 1
    %s635 = scalar_lea.sflag [#allocation12], 1
    %636 = vsyncpa %s635, 1

</llo_original>
